<compile_context>
chip_gen: v6e
topology: v6e:2x2x1
jax: 0.10.0
libtpu: 0.0.40
codegen_flags: <defaults>
</compile_context>

<pallas_src>
import functools
import math

import jax
import jax.numpy as jnp
import numpy as np
from jax.experimental import pallas as pl
from jax.experimental.pallas import tpu as pltpu


def _round_up(x, m):
    return ((x + m - 1) // m) * m


def _crop_kernel(x_ref, o_ref, *, n, tl):
    # x_ref: (n, td) input tile, o_ref: (td, tl) output tile.
    # 1) Small transpose first: XLU work = td*n, independent of `length`/reps.
    #    (Input is f32 here; for bf16/int8 inputs an .astype(f32) before the transpose
    #     would avoid sub-32-bit sublane-packing relayouts for N=8.)
    xt = jnp.transpose(x_ref[...], (1, 0))                       # (td, n)

    # 2) Cyclic replication along the lane axis via a single tile (broadcast+reshape
    #    under the hood) -- no reps-long concat chain, no big-tile transpose.
    #    Correctness: either n | tl (so every lane tile holds the identical periodic
    #    pattern) or there is exactly one lane tile starting at offset 0; in both cases
    #    out[:, l] = x[l % n, :].
    reps = pl.cdiv(tl, n)
    rep = jnp.tile(xt, (1, reps))                                # (td, reps*n) >= (td, tl)

    # 3) Lane-dense store: tl is a multiple of 128, so this is an unmasked full-lane store.
    o_ref[...] = rep if reps * n == tl else rep[:, :tl]


def crop(x, length, *, td_pref=256, tl_pref=1024):
    """out[d, i] = x[i % N, d]; returns an array of shape (D, length)."""
    n, d = x.shape
    lane = 128

    # ---- lane (length) tiling: multiples of 128 => lane-dense stores ----
    lcm = n * lane // math.gcd(n, lane)
    if lcm <= tl_pref:
        # Lane tile that is a multiple of both 128 and n: every lane tile shares the
        # same cyclic pattern, so the kernel needs no per-tile offset handling.
        tl = min(_round_up(tl_pref, lcm), _round_up(length, lcm))
    else:
        # Awkward n (lcm(n,128) too large): fall back to a single lane tile covering
        # the whole padded length (offset 0). Fine for this module's small shapes.
        tl = _round_up(length, lane)
    lpad = _round_up(length, tl)

    # ---- sublane (D) tiling ----
    if d <= td_pref:
        td = d
    elif d % td_pref == 0:
        td = td_pref
    else:
        td = d  # block == full array dim is always a legal block shape

    grid = (d // td, lpad // tl)

    out_padded = pl.pallas_call(
        functools.partial(_crop_kernel, n=n, tl=tl),
        out_shape=jax.ShapeDtypeStruct((d, lpad), x.dtype),
        grid=grid,
        in_specs=[pl.BlockSpec((n, td), lambda i, j: (0, i))],    # input block j-invariant
        out_specs=pl.BlockSpec((td, tl), lambda i, j: (i, j)),
        compiler_params=pltpu.CompilerParams(
            dimension_semantics=("parallel", "parallel")),        # megacore-shardable on v7x
    )(x)

    # Trim the lane padding back to the requested crop length (cheap XLA slice; keeps the
    # in-kernel store path lane-dense).
    return out_padded[:, :length]


if __name__ == "__main__":
    key = jax.random.PRNGKey(0)

    N, D = 8, 128
    LENGTH = 20  # > N and not a multiple of N, to exercise the modulo wrap-around

    x = jax.random.normal(key, (N, D), dtype=jnp.float32)

    out = jax.block_until_ready(crop(x, LENGTH))

    # Reference (numpy, mirrors the PyTorch forward exactly).
    xh = np.asarray(x)
    ref = np.array([xh[i % N] for i in range(LENGTH)]).transpose([1, 0])

    assert out.shape == (D, LENGTH), out.shape
    np.testing.assert_array_equal(np.asarray(out), ref)

    print("KERNEL_OK")
</pallas_src>

<mosaic_0001>
module attributes {stable_mosaic.version = 11 : i64} {
  func.func @_crop_kernel(%arg0: i32, %arg1: i32, %arg2: memref<8x128xf32, #tpu.memory_space<vmem>>, %arg3: memref<128x128xf32, #tpu.memory_space<vmem>>) attributes {dimension_semantics = [#tpu.dimension_semantics<parallel>, #tpu.dimension_semantics<parallel>], iteration_bounds = array<i64: 1, 1>, scalar_prefetch = 0 : i64, scratch_operands = 0 : i64, tpu.core_type = #tpu.core_type<tc>, window_params = [{transform_indices = @transform_0, window_bounds = array<i64: 8, 128>}, {transform_indices = @transform_1, window_bounds = array<i64: 128, 128>}]} {
    %c0 = arith.constant 0 : index
    %c0_0 = arith.constant 0 : index
    %0 = vector.load %arg2[%c0, %c0_0] : memref<8x128xf32, #tpu.memory_space<vmem>>, vector<8x128xf32>
    %1 = tpu.transpose %0, [1, 0] : vector<8x128xf32> -> vector<128x8xf32>
    %2 = tpu.concatenate %1, %1, %1, %1, %1, %1, %1, %1, %1, %1, %1, %1, %1, %1, %1, %1 in 1 : vector<128x8xf32>, vector<128x8xf32>, vector<128x8xf32>, vector<128x8xf32>, vector<128x8xf32>, vector<128x8xf32>, vector<128x8xf32>, vector<128x8xf32>, vector<128x8xf32>, vector<128x8xf32>, vector<128x8xf32>, vector<128x8xf32>, vector<128x8xf32>, vector<128x8xf32>, vector<128x8xf32>, vector<128x8xf32> -> vector<128x128xf32>
    %c0_1 = arith.constant 0 : index
    %c0_2 = arith.constant 0 : index
    %3 = vector.load %arg3[%c0_1, %c0_2] : memref<128x128xf32, #tpu.memory_space<vmem>>, vector<128x128xf32>
    tpu.vector_store %arg3[%c0_1, %c0_2], %2 {strides = array<i32>} : memref<128x128xf32, #tpu.memory_space<vmem>>, vector<128x128xf32>,
    return
  }
  func.func @transform_0(%arg0: i32, %arg1: i32) -> (i32, i32) {
    %c0_i32 = arith.constant 0 : i32
    %c0_i32_0 = arith.constant 0 : i32
    return %c0_i32, %arg0 : i32, i32
  }
  func.func @transform_1(%arg0: i32, %arg1: i32) -> (i32, i32) {
    %c0_i32 = arith.constant 0 : i32
    return %arg0, %arg1 : i32, i32
  }
}

</mosaic_0001>

<llo_original>
// kernel: tpu_custom_call.1
$region0: #{tpu_custom_call.1}
  #allocation0 [shape = 'u32[]', space=smem, size = 0x4, offset = 0x4, fixed_abs, tag = 'smem constant byte address 0x4 - core index']
  #allocation1 [shape = 'u32[144,128]{1,0:T(1,128)}', space=vmem, size = 0x12000, scoped, tag = 'internal scratch']
  %s0 = inlined_call_operand.hbm [shape: f32[8,128], index: 0, kind: input, shape index: {}]
  %s1 = inlined_call_operand.hbm [shape: f32[128,128], index: 1, kind: output, shape index: {}]
  %s2 = sld [smem:[#allocation0]]
  $region18: #{tpu_custom_call.1} parent=0
    _
  %s4 = ssub.s32 1, %s2
  %s5 = scalar_select 0, %s4, %s2
  $region1: #{tpu_custom_call.1} parent=0
    #allocation2 [shape = 'u8[4096]{0}', space=vmem, size = 0x1000, scoped, tag = 'input window, operand 0, single buffered']
    #allocation3 [shape = 's32[1]{0}', space=sflag, size = 0x4, scoped, tag = 'scoped memory for tpu_custom_call.1']
    #allocation4 [shape = 's32[1]{0}', space=sflag, size = 0x4, scoped, tag = 'scoped memory for tpu_custom_call.1']
    #allocation5 [shape = 'u8[65536]{0}', space=vmem, size = 0x10000, scoped, tag = 'output window, operand 0, single buffered']
    %6 = vsyncpa [#allocation3], 0
    %7 = vsyncpa [#allocation4], 0
    // Predicated region
    $region2: #{tpu_custom_call.1} parent=1 // pred_check
      _
    $region3: #{tpu_custom_call.1} parent=1 // pred_check_branch
      %9 = sbr.rel (0) target = $region5
    $region4: #{tpu_custom_call.1} parent=1 // pred_region
      %s11 = ssub.s32 128, 128
      %12 = vsyncadd [#allocation3], %s11
      %s14 = sshll.u32 [#allocation2], 4
      %s15 = int_to_ptr.vmem [resolvable:$true] %s14
      %17 = dma.hbm_to_vmem [thread:$0]  %s0, 128, %s15, [#allocation3]
    $region5: #{tpu_custom_call.1} parent=1 // pred_fallthru
      _
    // Predicated region
    $region6: #{tpu_custom_call.1} parent=1 // pred_check
      _
    $region7: #{tpu_custom_call.1} parent=1 // pred_check_branch
      %19 = sbr.rel (0) target = $region9
    $region8: #{tpu_custom_call.1} parent=1 // pred_region
      %20 = dma.done [#allocation3], 128
    $region9: #{tpu_custom_call.1} parent=1 // pred_fallthru
      _
    %v21 = vld [vmem:[#allocation2] sm:$0xff]
    %22 = vxpose.xlu0.b32.start [1/16] %v21, 128
    %23 = vxpose.xlu0.b32.cont [2/16] 0.0, 128
    %24 = vxpose.xlu0.b32.cont [3/16] 0.0, 128
    %25 = vxpose.xlu0.b32.cont [4/16] 0.0, 128
    %26 = vxpose.xlu0.b32.cont [5/16] 0.0, 128
    %27 = vxpose.xlu0.b32.cont [6/16] 0.0, 128
    %28 = vxpose.xlu0.b32.cont [7/16] 0.0, 128
    %29 = vxpose.xlu0.b32.cont [8/16] 0.0, 128
    %30 = vxpose.xlu0.b32.cont [9/16] 0.0, 128
    %31 = vxpose.xlu0.b32.cont [10/16] 0.0, 128
    %32 = vxpose.xlu0.b32.cont [11/16] 0.0, 128
    %33 = vxpose.xlu0.b32.cont [12/16] 0.0, 128
    %34 = vxpose.xlu0.b32.cont [13/16] 0.0, 128
    %35 = vxpose.xlu0.b32.cont [14/16] 0.0, 128
    %36 = vxpose.xlu0.b32.cont [15/16] 0.0, 128
    %37 = vxpose.xlu0.b32.end [16/16] 0.0, 128
    %v38 = vpop.trf.xlu0
    %v39 = vpop.trf.xlu0
    %v40 = vpop.trf.xlu0
    %v41 = vpop.trf.xlu0
    %v42 = vpop.trf.xlu0
    %v43 = vpop.trf.xlu0
    %v44 = vpop.trf.xlu0
    %v45 = vpop.trf.xlu0
    %v46 = vpop.trf.xlu0
    %v47 = vpop.trf.xlu0
    %v48 = vpop.trf.xlu0
    %v49 = vpop.trf.xlu0
    %v50 = vpop.trf.xlu0
    %v51 = vpop.trf.xlu0
    %v52 = vpop.trf.xlu0
    %v53 = vpop.trf.xlu0
    %70 = vrot.lane.b32.xlu0 %v38, 8
    %v71 = vpop.permute.xlu0 %70
    %72 = vrot.lane.b32.xlu0 %v39, 8
    %v73 = vpop.permute.xlu0 %72
    %74 = vrot.lane.b32.xlu0 %v40, 8
    %v75 = vpop.permute.xlu0 %74
    %76 = vrot.lane.b32.xlu0 %v41, 8
    %v77 = vpop.permute.xlu0 %76
    %78 = vrot.lane.b32.xlu0 %v42, 8
    %v79 = vpop.permute.xlu0 %78
    %80 = vrot.lane.b32.xlu0 %v43, 8
    %v81 = vpop.permute.xlu0 %80
    %82 = vrot.lane.b32.xlu0 %v44, 8
    %v83 = vpop.permute.xlu0 %82
    %84 = vrot.lane.b32.xlu0 %v45, 8
    %v85 = vpop.permute.xlu0 %84
    %86 = vrot.lane.b32.xlu0 %v46, 8
    %v87 = vpop.permute.xlu0 %86
    %88 = vrot.lane.b32.xlu0 %v47, 8
    %v89 = vpop.permute.xlu0 %88
    %90 = vrot.lane.b32.xlu0 %v48, 8
    %v91 = vpop.permute.xlu0 %90
    %92 = vrot.lane.b32.xlu0 %v49, 8
    %v93 = vpop.permute.xlu0 %92
    %94 = vrot.lane.b32.xlu0 %v50, 8
    %v95 = vpop.permute.xlu0 %94
    %96 = vrot.lane.b32.xlu0 %v51, 8
    %v97 = vpop.permute.xlu0 %96
    %98 = vrot.lane.b32.xlu0 %v52, 8
    %v99 = vpop.permute.xlu0 %98
    %100 = vrot.lane.b32.xlu0 %v53, 8
    %v101 = vpop.permute.xlu0 %100
    %118 = vrot.lane.b32.xlu0 %v38, 16
    %v119 = vpop.permute.xlu0 %118
    %120 = vrot.lane.b32.xlu0 %v39, 16
    %v121 = vpop.permute.xlu0 %120
    %122 = vrot.lane.b32.xlu0 %v40, 16
    %v123 = vpop.permute.xlu0 %122
    %124 = vrot.lane.b32.xlu0 %v41, 16
    %v125 = vpop.permute.xlu0 %124
    %126 = vrot.lane.b32.xlu0 %v42, 16
    %v127 = vpop.permute.xlu0 %126
    %128 = vrot.lane.b32.xlu0 %v43, 16
    %v129 = vpop.permute.xlu0 %128
    %130 = vrot.lane.b32.xlu0 %v44, 16
    %v131 = vpop.permute.xlu0 %130
    %132 = vrot.lane.b32.xlu0 %v45, 16
    %v133 = vpop.permute.xlu0 %132
    %134 = vrot.lane.b32.xlu0 %v46, 16
    %v135 = vpop.permute.xlu0 %134
    %136 = vrot.lane.b32.xlu0 %v47, 16
    %v137 = vpop.permute.xlu0 %136
    %138 = vrot.lane.b32.xlu0 %v48, 16
    %v139 = vpop.permute.xlu0 %138
    %140 = vrot.lane.b32.xlu0 %v49, 16
    %v141 = vpop.permute.xlu0 %140
    %142 = vrot.lane.b32.xlu0 %v50, 16
    %v143 = vpop.permute.xlu0 %142
    %144 = vrot.lane.b32.xlu0 %v51, 16
    %v145 = vpop.permute.xlu0 %144
    %146 = vrot.lane.b32.xlu0 %v52, 16
    %v147 = vpop.permute.xlu0 %146
    %148 = vrot.lane.b32.xlu0 %v53, 16
    %v149 = vpop.permute.xlu0 %148
    %166 = vrot.lane.b32.xlu0 %v38, 24
    %v167 = vpop.permute.xlu0 %166
    %168 = vrot.lane.b32.xlu0 %v39, 24
    %v169 = vpop.permute.xlu0 %168
    %170 = vrot.lane.b32.xlu0 %v40, 24
    %v171 = vpop.permute.xlu0 %170
    %172 = vrot.lane.b32.xlu0 %v41, 24
    %v173 = vpop.permute.xlu0 %172
    %174 = vrot.lane.b32.xlu0 %v42, 24
    %v175 = vpop.permute.xlu0 %174
    %176 = vrot.lane.b32.xlu0 %v43, 24
    %v177 = vpop.permute.xlu0 %176
    %178 = vrot.lane.b32.xlu0 %v44, 24
    %v179 = vpop.permute.xlu0 %178
    %180 = vrot.lane.b32.xlu0 %v45, 24
    %v181 = vpop.permute.xlu0 %180
    %182 = vrot.lane.b32.xlu0 %v46, 24
    %v183 = vpop.permute.xlu0 %182
    %184 = vrot.lane.b32.xlu0 %v47, 24
    %v185 = vpop.permute.xlu0 %184
    %186 = vrot.lane.b32.xlu0 %v48, 24
    %v187 = vpop.permute.xlu0 %186
    %188 = vrot.lane.b32.xlu0 %v49, 24
    %v189 = vpop.permute.xlu0 %188
    %190 = vrot.lane.b32.xlu0 %v50, 24
    %v191 = vpop.permute.xlu0 %190
    %192 = vrot.lane.b32.xlu0 %v51, 24
    %v193 = vpop.permute.xlu0 %192
    %194 = vrot.lane.b32.xlu0 %v52, 24
    %v195 = vpop.permute.xlu0 %194
    %196 = vrot.lane.b32.xlu0 %v53, 24
    %v197 = vpop.permute.xlu0 %196
    %214 = vrot.lane.b32.xlu0 %v38, 32
    %v215 = vpop.permute.xlu0 %214
    %216 = vrot.lane.b32.xlu0 %v39, 32
    %v217 = vpop.permute.xlu0 %216
    %218 = vrot.lane.b32.xlu0 %v40, 32
    %v219 = vpop.permute.xlu0 %218
    %220 = vrot.lane.b32.xlu0 %v41, 32
    %v221 = vpop.permute.xlu0 %220
    %222 = vrot.lane.b32.xlu0 %v42, 32
    %v223 = vpop.permute.xlu0 %222
    %224 = vrot.lane.b32.xlu0 %v43, 32
    %v225 = vpop.permute.xlu0 %224
    %226 = vrot.lane.b32.xlu0 %v44, 32
    %v227 = vpop.permute.xlu0 %226
    %228 = vrot.lane.b32.xlu0 %v45, 32
    %v229 = vpop.permute.xlu0 %228
    %230 = vrot.lane.b32.xlu0 %v46, 32
    %v231 = vpop.permute.xlu0 %230
    %232 = vrot.lane.b32.xlu0 %v47, 32
    %v233 = vpop.permute.xlu0 %232
    %234 = vrot.lane.b32.xlu0 %v48, 32
    %v235 = vpop.permute.xlu0 %234
    %236 = vrot.lane.b32.xlu0 %v49, 32
    %v237 = vpop.permute.xlu0 %236
    %238 = vrot.lane.b32.xlu0 %v50, 32
    %v239 = vpop.permute.xlu0 %238
    %240 = vrot.lane.b32.xlu0 %v51, 32
    %v241 = vpop.permute.xlu0 %240
    %242 = vrot.lane.b32.xlu0 %v52, 32
    %v243 = vpop.permute.xlu0 %242
    %244 = vrot.lane.b32.xlu0 %v53, 32
    %v245 = vpop.permute.xlu0 %244
    %262 = vrot.lane.b32.xlu0 %v38, 40
    %v263 = vpop.permute.xlu0 %262
    %264 = vrot.lane.b32.xlu0 %v39, 40
    %v265 = vpop.permute.xlu0 %264
    %266 = vrot.lane.b32.xlu0 %v40, 40
    %v267 = vpop.permute.xlu0 %266
    %268 = vrot.lane.b32.xlu0 %v41, 40
    %v269 = vpop.permute.xlu0 %268
    %270 = vrot.lane.b32.xlu0 %v42, 40
    %v271 = vpop.permute.xlu0 %270
    %272 = vrot.lane.b32.xlu0 %v43, 40
    %v273 = vpop.permute.xlu0 %272
    %274 = vrot.lane.b32.xlu0 %v44, 40
    %v275 = vpop.permute.xlu0 %274
    %276 = vrot.lane.b32.xlu0 %v45, 40
    %v277 = vpop.permute.xlu0 %276
    %278 = vrot.lane.b32.xlu0 %v46, 40
    %v279 = vpop.permute.xlu0 %278
    %280 = vrot.lane.b32.xlu0 %v47, 40
    %v281 = vpop.permute.xlu0 %280
    %282 = vrot.lane.b32.xlu0 %v48, 40
    %v283 = vpop.permute.xlu0 %282
    %284 = vrot.lane.b32.xlu0 %v49, 40
    %v285 = vpop.permute.xlu0 %284
    %286 = vrot.lane.b32.xlu0 %v50, 40
    %v287 = vpop.permute.xlu0 %286
    %288 = vrot.lane.b32.xlu0 %v51, 40
    %v289 = vpop.permute.xlu0 %288
    %290 = vrot.lane.b32.xlu0 %v52, 40
    %v291 = vpop.permute.xlu0 %290
    %292 = vrot.lane.b32.xlu0 %v53, 40
    %v293 = vpop.permute.xlu0 %292
    %310 = vrot.lane.b32.xlu0 %v38, 48
    %v311 = vpop.permute.xlu0 %310
    %312 = vrot.lane.b32.xlu0 %v39, 48
    %v313 = vpop.permute.xlu0 %312
    %314 = vrot.lane.b32.xlu0 %v40, 48
    %v315 = vpop.permute.xlu0 %314
    %316 = vrot.lane.b32.xlu0 %v41, 48
    %v317 = vpop.permute.xlu0 %316
    %318 = vrot.lane.b32.xlu0 %v42, 48
    %v319 = vpop.permute.xlu0 %318
    %320 = vrot.lane.b32.xlu0 %v43, 48
    %v321 = vpop.permute.xlu0 %320
    %322 = vrot.lane.b32.xlu0 %v44, 48
    %v323 = vpop.permute.xlu0 %322
    %324 = vrot.lane.b32.xlu0 %v45, 48
    %v325 = vpop.permute.xlu0 %324
    %326 = vrot.lane.b32.xlu0 %v46, 48
    %v327 = vpop.permute.xlu0 %326
    %328 = vrot.lane.b32.xlu0 %v47, 48
    %v329 = vpop.permute.xlu0 %328
    %330 = vrot.lane.b32.xlu0 %v48, 48
    %v331 = vpop.permute.xlu0 %330
    %332 = vrot.lane.b32.xlu0 %v49, 48
    %v333 = vpop.permute.xlu0 %332
    %334 = vrot.lane.b32.xlu0 %v50, 48
    %v335 = vpop.permute.xlu0 %334
    %336 = vrot.lane.b32.xlu0 %v51, 48
    %v337 = vpop.permute.xlu0 %336
    %338 = vrot.lane.b32.xlu0 %v52, 48
    %v339 = vpop.permute.xlu0 %338
    %340 = vrot.lane.b32.xlu0 %v53, 48
    %v341 = vpop.permute.xlu0 %340
    %358 = vrot.lane.b32.xlu0 %v38, 56
    %v359 = vpop.permute.xlu0 %358
    %360 = vrot.lane.b32.xlu0 %v39, 56
    %v361 = vpop.permute.xlu0 %360
    %362 = vrot.lane.b32.xlu0 %v40, 56
    %v363 = vpop.permute.xlu0 %362
    %364 = vrot.lane.b32.xlu0 %v41, 56
    %v365 = vpop.permute.xlu0 %364
    %366 = vrot.lane.b32.xlu0 %v42, 56
    %v367 = vpop.permute.xlu0 %366
    %368 = vrot.lane.b32.xlu0 %v43, 56
    %v369 = vpop.permute.xlu0 %368
    %370 = vrot.lane.b32.xlu0 %v44, 56
    %v371 = vpop.permute.xlu0 %370
    %372 = vrot.lane.b32.xlu0 %v45, 56
    %v373 = vpop.permute.xlu0 %372
    %374 = vrot.lane.b32.xlu0 %v46, 56
    %v375 = vpop.permute.xlu0 %374
    %376 = vrot.lane.b32.xlu0 %v47, 56
    %v377 = vpop.permute.xlu0 %376
    %378 = vrot.lane.b32.xlu0 %v48, 56
    %v379 = vpop.permute.xlu0 %378
    %380 = vrot.lane.b32.xlu0 %v49, 56
    %v381 = vpop.permute.xlu0 %380
    %382 = vrot.lane.b32.xlu0 %v50, 56
    %v383 = vpop.permute.xlu0 %382
    %384 = vrot.lane.b32.xlu0 %v51, 56
    %v385 = vpop.permute.xlu0 %384
    %386 = vrot.lane.b32.xlu0 %v52, 56
    %v387 = vpop.permute.xlu0 %386
    %388 = vrot.lane.b32.xlu0 %v53, 56
    %v389 = vpop.permute.xlu0 %388
    %406 = vrot.lane.b32.xlu0 %v38, 64
    %v407 = vpop.permute.xlu0 %406
    %408 = vrot.lane.b32.xlu0 %v39, 64
    %v409 = vpop.permute.xlu0 %408
    %410 = vrot.lane.b32.xlu0 %v40, 64
    %v411 = vpop.permute.xlu0 %410
    %412 = vrot.lane.b32.xlu0 %v41, 64
    %v413 = vpop.permute.xlu0 %412
    %414 = vrot.lane.b32.xlu0 %v42, 64
    %v415 = vpop.permute.xlu0 %414
    %416 = vrot.lane.b32.xlu0 %v43, 64
    %v417 = vpop.permute.xlu0 %416
    %418 = vrot.lane.b32.xlu0 %v44, 64
    %v419 = vpop.permute.xlu0 %418
    %420 = vrot.lane.b32.xlu0 %v45, 64
    %v421 = vpop.permute.xlu0 %420
    %422 = vrot.lane.b32.xlu0 %v46, 64
    %v423 = vpop.permute.xlu0 %422
    %424 = vrot.lane.b32.xlu0 %v47, 64
    %v425 = vpop.permute.xlu0 %424
    %426 = vrot.lane.b32.xlu0 %v48, 64
    %v427 = vpop.permute.xlu0 %426
    %428 = vrot.lane.b32.xlu0 %v49, 64
    %v429 = vpop.permute.xlu0 %428
    %430 = vrot.lane.b32.xlu0 %v50, 64
    %v431 = vpop.permute.xlu0 %430
    %432 = vrot.lane.b32.xlu0 %v51, 64
    %v433 = vpop.permute.xlu0 %432
    %434 = vrot.lane.b32.xlu0 %v52, 64
    %v435 = vpop.permute.xlu0 %434
    %436 = vrot.lane.b32.xlu0 %v53, 64
    %v437 = vpop.permute.xlu0 %436
    %454 = vrot.lane.b32.xlu0 %v38, 72
    %v455 = vpop.permute.xlu0 %454
    %456 = vrot.lane.b32.xlu0 %v39, 72
    %v457 = vpop.permute.xlu0 %456
    %458 = vrot.lane.b32.xlu0 %v40, 72
    %v459 = vpop.permute.xlu0 %458
    %460 = vrot.lane.b32.xlu0 %v41, 72
    %v461 = vpop.permute.xlu0 %460
    %462 = vrot.lane.b32.xlu0 %v42, 72
    %v463 = vpop.permute.xlu0 %462
    %464 = vrot.lane.b32.xlu0 %v43, 72
    %v465 = vpop.permute.xlu0 %464
    %466 = vrot.lane.b32.xlu0 %v44, 72
    %v467 = vpop.permute.xlu0 %466
    %468 = vrot.lane.b32.xlu0 %v45, 72
    %v469 = vpop.permute.xlu0 %468
    %470 = vrot.lane.b32.xlu0 %v46, 72
    %v471 = vpop.permute.xlu0 %470
    %472 = vrot.lane.b32.xlu0 %v47, 72
    %v473 = vpop.permute.xlu0 %472
    %474 = vrot.lane.b32.xlu0 %v48, 72
    %v475 = vpop.permute.xlu0 %474
    %476 = vrot.lane.b32.xlu0 %v49, 72
    %v477 = vpop.permute.xlu0 %476
    %478 = vrot.lane.b32.xlu0 %v50, 72
    %v479 = vpop.permute.xlu0 %478
    %480 = vrot.lane.b32.xlu0 %v51, 72
    %v481 = vpop.permute.xlu0 %480
    %482 = vrot.lane.b32.xlu0 %v52, 72
    %v483 = vpop.permute.xlu0 %482
    %484 = vrot.lane.b32.xlu0 %v53, 72
    %v485 = vpop.permute.xlu0 %484
    %502 = vrot.lane.b32.xlu0 %v38, 80
    %v503 = vpop.permute.xlu0 %502
    %504 = vrot.lane.b32.xlu0 %v39, 80
    %v505 = vpop.permute.xlu0 %504
    %506 = vrot.lane.b32.xlu0 %v40, 80
    %v507 = vpop.permute.xlu0 %506
    %508 = vrot.lane.b32.xlu0 %v41, 80
    %v509 = vpop.permute.xlu0 %508
    %510 = vrot.lane.b32.xlu0 %v42, 80
    %v511 = vpop.permute.xlu0 %510
    %512 = vrot.lane.b32.xlu0 %v43, 80
    %v513 = vpop.permute.xlu0 %512
    %514 = vrot.lane.b32.xlu0 %v44, 80
    %v515 = vpop.permute.xlu0 %514
    %516 = vrot.lane.b32.xlu0 %v45, 80
    %v517 = vpop.permute.xlu0 %516
    %518 = vrot.lane.b32.xlu0 %v46, 80
    %v519 = vpop.permute.xlu0 %518
    %520 = vrot.lane.b32.xlu0 %v47, 80
    %v521 = vpop.permute.xlu0 %520
    %522 = vrot.lane.b32.xlu0 %v48, 80
    %v523 = vpop.permute.xlu0 %522
    %524 = vrot.lane.b32.xlu0 %v49, 80
    %v525 = vpop.permute.xlu0 %524
    %526 = vrot.lane.b32.xlu0 %v50, 80
    %v527 = vpop.permute.xlu0 %526
    %528 = vrot.lane.b32.xlu0 %v51, 80
    %v529 = vpop.permute.xlu0 %528
    %530 = vrot.lane.b32.xlu0 %v52, 80
    %v531 = vpop.permute.xlu0 %530
    %532 = vrot.lane.b32.xlu0 %v53, 80
    %v533 = vpop.permute.xlu0 %532
    %550 = vrot.lane.b32.xlu0 %v38, 88
    %v551 = vpop.permute.xlu0 %550
    %552 = vrot.lane.b32.xlu0 %v39, 88
    %v553 = vpop.permute.xlu0 %552
    %554 = vrot.lane.b32.xlu0 %v40, 88
    %v555 = vpop.permute.xlu0 %554
    %556 = vrot.lane.b32.xlu0 %v41, 88
    %v557 = vpop.permute.xlu0 %556
    %558 = vrot.lane.b32.xlu0 %v42, 88
    %v559 = vpop.permute.xlu0 %558
    %560 = vrot.lane.b32.xlu0 %v43, 88
    %v561 = vpop.permute.xlu0 %560
    %562 = vrot.lane.b32.xlu0 %v44, 88
    %v563 = vpop.permute.xlu0 %562
    %564 = vrot.lane.b32.xlu0 %v45, 88
    %v565 = vpop.permute.xlu0 %564
    %566 = vrot.lane.b32.xlu0 %v46, 88
    %v567 = vpop.permute.xlu0 %566
    %568 = vrot.lane.b32.xlu0 %v47, 88
    %v569 = vpop.permute.xlu0 %568
    %570 = vrot.lane.b32.xlu0 %v48, 88
    %v571 = vpop.permute.xlu0 %570
    %572 = vrot.lane.b32.xlu0 %v49, 88
    %v573 = vpop.permute.xlu0 %572
    %574 = vrot.lane.b32.xlu0 %v50, 88
    %v575 = vpop.permute.xlu0 %574
    %576 = vrot.lane.b32.xlu0 %v51, 88
    %v577 = vpop.permute.xlu0 %576
    %578 = vrot.lane.b32.xlu0 %v52, 88
    %v579 = vpop.permute.xlu0 %578
    %580 = vrot.lane.b32.xlu0 %v53, 88
    %v581 = vpop.permute.xlu0 %580
    %598 = vrot.lane.b32.xlu0 %v38, 96
    %v599 = vpop.permute.xlu0 %598
    %600 = vrot.lane.b32.xlu0 %v39, 96
    %v601 = vpop.permute.xlu0 %600
    %602 = vrot.lane.b32.xlu0 %v40, 96
    %v603 = vpop.permute.xlu0 %602
    %604 = vrot.lane.b32.xlu0 %v41, 96
    %v605 = vpop.permute.xlu0 %604
    %606 = vrot.lane.b32.xlu0 %v42, 96
    %v607 = vpop.permute.xlu0 %606
    %608 = vrot.lane.b32.xlu0 %v43, 96
    %v609 = vpop.permute.xlu0 %608
    %610 = vrot.lane.b32.xlu0 %v44, 96
    %v611 = vpop.permute.xlu0 %610
    %612 = vrot.lane.b32.xlu0 %v45, 96
    %v613 = vpop.permute.xlu0 %612
    %614 = vrot.lane.b32.xlu0 %v46, 96
    %v615 = vpop.permute.xlu0 %614
    %616 = vrot.lane.b32.xlu0 %v47, 96
    %v617 = vpop.permute.xlu0 %616
    %618 = vrot.lane.b32.xlu0 %v48, 96
    %v619 = vpop.permute.xlu0 %618
    %620 = vrot.lane.b32.xlu0 %v49, 96
    %v621 = vpop.permute.xlu0 %620
    %622 = vrot.lane.b32.xlu0 %v50, 96
    %v623 = vpop.permute.xlu0 %622
    %624 = vrot.lane.b32.xlu0 %v51, 96
    %v625 = vpop.permute.xlu0 %624
    %626 = vrot.lane.b32.xlu0 %v52, 96
    %v627 = vpop.permute.xlu0 %626
    %628 = vrot.lane.b32.xlu0 %v53, 96
    %v629 = vpop.permute.xlu0 %628
    %646 = vrot.lane.b32.xlu0 %v38, 104
    %v647 = vpop.permute.xlu0 %646
    %648 = vrot.lane.b32.xlu0 %v39, 104
    %v649 = vpop.permute.xlu0 %648
    %650 = vrot.lane.b32.xlu0 %v40, 104
    %v651 = vpop.permute.xlu0 %650
    %652 = vrot.lane.b32.xlu0 %v41, 104
    %v653 = vpop.permute.xlu0 %652
    %654 = vrot.lane.b32.xlu0 %v42, 104
    %v655 = vpop.permute.xlu0 %654
    %656 = vrot.lane.b32.xlu0 %v43, 104
    %v657 = vpop.permute.xlu0 %656
    %658 = vrot.lane.b32.xlu0 %v44, 104
    %v659 = vpop.permute.xlu0 %658
    %660 = vrot.lane.b32.xlu0 %v45, 104
    %v661 = vpop.permute.xlu0 %660
    %662 = vrot.lane.b32.xlu0 %v46, 104
    %v663 = vpop.permute.xlu0 %662
    %664 = vrot.lane.b32.xlu0 %v47, 104
    %v665 = vpop.permute.xlu0 %664
    %666 = vrot.lane.b32.xlu0 %v48, 104
    %v667 = vpop.permute.xlu0 %666
    %668 = vrot.lane.b32.xlu0 %v49, 104
    %v669 = vpop.permute.xlu0 %668
    %670 = vrot.lane.b32.xlu0 %v50, 104
    %v671 = vpop.permute.xlu0 %670
    %672 = vrot.lane.b32.xlu0 %v51, 104
    %v673 = vpop.permute.xlu0 %672
    %674 = vrot.lane.b32.xlu0 %v52, 104
    %v675 = vpop.permute.xlu0 %674
    %676 = vrot.lane.b32.xlu0 %v53, 104
    %v677 = vpop.permute.xlu0 %676
    %694 = vrot.lane.b32.xlu0 %v38, 112
    %v695 = vpop.permute.xlu0 %694
    %696 = vrot.lane.b32.xlu0 %v39, 112
    %v697 = vpop.permute.xlu0 %696
    %698 = vrot.lane.b32.xlu0 %v40, 112
    %v699 = vpop.permute.xlu0 %698
    %700 = vrot.lane.b32.xlu0 %v41, 112
    %v701 = vpop.permute.xlu0 %700
    %702 = vrot.lane.b32.xlu0 %v42, 112
    %v703 = vpop.permute.xlu0 %702
    %704 = vrot.lane.b32.xlu0 %v43, 112
    %v705 = vpop.permute.xlu0 %704
    %706 = vrot.lane.b32.xlu0 %v44, 112
    %v707 = vpop.permute.xlu0 %706
    %708 = vrot.lane.b32.xlu0 %v45, 112
    %v709 = vpop.permute.xlu0 %708
    %710 = vrot.lane.b32.xlu0 %v46, 112
    %v711 = vpop.permute.xlu0 %710
    %712 = vrot.lane.b32.xlu0 %v47, 112
    %v713 = vpop.permute.xlu0 %712
    %714 = vrot.lane.b32.xlu0 %v48, 112
    %v715 = vpop.permute.xlu0 %714
    %716 = vrot.lane.b32.xlu0 %v49, 112
    %v717 = vpop.permute.xlu0 %716
    %718 = vrot.lane.b32.xlu0 %v50, 112
    %v719 = vpop.permute.xlu0 %718
    %720 = vrot.lane.b32.xlu0 %v51, 112
    %v721 = vpop.permute.xlu0 %720
    %722 = vrot.lane.b32.xlu0 %v52, 112
    %v723 = vpop.permute.xlu0 %722
    %724 = vrot.lane.b32.xlu0 %v53, 112
    %v725 = vpop.permute.xlu0 %724
    %742 = vrot.lane.b32.xlu0 %v38, 120
    %v743 = vpop.permute.xlu0 %742
    %744 = vrot.lane.b32.xlu0 %v39, 120
    %v745 = vpop.permute.xlu0 %744
    %746 = vrot.lane.b32.xlu0 %v40, 120
    %v747 = vpop.permute.xlu0 %746
    %748 = vrot.lane.b32.xlu0 %v41, 120
    %v749 = vpop.permute.xlu0 %748
    %750 = vrot.lane.b32.xlu0 %v42, 120
    %v751 = vpop.permute.xlu0 %750
    %752 = vrot.lane.b32.xlu0 %v43, 120
    %v753 = vpop.permute.xlu0 %752
    %754 = vrot.lane.b32.xlu0 %v44, 120
    %v755 = vpop.permute.xlu0 %754
    %756 = vrot.lane.b32.xlu0 %v45, 120
    %v757 = vpop.permute.xlu0 %756
    %758 = vrot.lane.b32.xlu0 %v46, 120
    %v759 = vpop.permute.xlu0 %758
    %760 = vrot.lane.b32.xlu0 %v47, 120
    %v761 = vpop.permute.xlu0 %760
    %762 = vrot.lane.b32.xlu0 %v48, 120
    %v763 = vpop.permute.xlu0 %762
    %764 = vrot.lane.b32.xlu0 %v49, 120
    %v765 = vpop.permute.xlu0 %764
    %766 = vrot.lane.b32.xlu0 %v50, 120
    %v767 = vpop.permute.xlu0 %766
    %768 = vrot.lane.b32.xlu0 %v51, 120
    %v769 = vpop.permute.xlu0 %768
    %770 = vrot.lane.b32.xlu0 %v52, 120
    %v771 = vpop.permute.xlu0 %770
    %772 = vrot.lane.b32.xlu0 %v53, 120
    %v773 = vpop.permute.xlu0 %772
    %vm790 = vcmask 64512
    %v791 = vsel %vm790, %v38, %v71
    %v792 = vsel %vm790, %v39, %v73
    %v793 = vsel %vm790, %v40, %v75
    %v794 = vsel %vm790, %v41, %v77
    %v795 = vsel %vm790, %v42, %v79
    %v796 = vsel %vm790, %v43, %v81
    %v797 = vsel %vm790, %v44, %v83
    %v798 = vsel %vm790, %v45, %v85
    %v799 = vsel %vm790, %v46, %v87
    %v800 = vsel %vm790, %v47, %v89
    %v801 = vsel %vm790, %v48, %v91
    %v802 = vsel %vm790, %v49, %v93
    %v803 = vsel %vm790, %v50, %v95
    %v804 = vsel %vm790, %v51, %v97
    %v805 = vsel %vm790, %v52, %v99
    %v806 = vsel %vm790, %v53, %v101
    %vm807 = vcmask 130048
    %v808 = vsel %vm807, %v791, %v119
    %v809 = vsel %vm807, %v792, %v121
    %v810 = vsel %vm807, %v793, %v123
    %v811 = vsel %vm807, %v794, %v125
    %v812 = vsel %vm807, %v795, %v127
    %v813 = vsel %vm807, %v796, %v129
    %v814 = vsel %vm807, %v797, %v131
    %v815 = vsel %vm807, %v798, %v133
    %v816 = vsel %vm807, %v799, %v135
    %v817 = vsel %vm807, %v800, %v137
    %v818 = vsel %vm807, %v801, %v139
    %v819 = vsel %vm807, %v802, %v141
    %v820 = vsel %vm807, %v803, %v143
    %v821 = vsel %vm807, %v804, %v145
    %v822 = vsel %vm807, %v805, %v147
    %v823 = vsel %vm807, %v806, %v149
    %vm824 = vcmask 195584
    %v825 = vsel %vm824, %v808, %v167
    %v826 = vsel %vm824, %v809, %v169
    %v827 = vsel %vm824, %v810, %v171
    %v828 = vsel %vm824, %v811, %v173
    %v829 = vsel %vm824, %v812, %v175
    %v830 = vsel %vm824, %v813, %v177
    %v831 = vsel %vm824, %v814, %v179
    %v832 = vsel %vm824, %v815, %v181
    %v833 = vsel %vm824, %v816, %v183
    %v834 = vsel %vm824, %v817, %v185
    %v835 = vsel %vm824, %v818, %v187
    %v836 = vsel %vm824, %v819, %v189
    %v837 = vsel %vm824, %v820, %v191
    %v838 = vsel %vm824, %v821, %v193
    %v839 = vsel %vm824, %v822, %v195
    %v840 = vsel %vm824, %v823, %v197
    %vm841 = vcmask 261120
    %v842 = vsel %vm841, %v825, %v215
    %v843 = vsel %vm841, %v826, %v217
    %v844 = vsel %vm841, %v827, %v219
    %v845 = vsel %vm841, %v828, %v221
    %v846 = vsel %vm841, %v829, %v223
    %v847 = vsel %vm841, %v830, %v225
    %v848 = vsel %vm841, %v831, %v227
    %v849 = vsel %vm841, %v832, %v229
    %v850 = vsel %vm841, %v833, %v231
    %v851 = vsel %vm841, %v834, %v233
    %v852 = vsel %vm841, %v835, %v235
    %v853 = vsel %vm841, %v836, %v237
    %v854 = vsel %vm841, %v837, %v239
    %v855 = vsel %vm841, %v838, %v241
    %v856 = vsel %vm841, %v839, %v243
    %v857 = vsel %vm841, %v840, %v245
    %vm858 = vcmask 326656
    %v859 = vsel %vm858, %v842, %v263
    %v860 = vsel %vm858, %v843, %v265
    %v861 = vsel %vm858, %v844, %v267
    %v862 = vsel %vm858, %v845, %v269
    %v863 = vsel %vm858, %v846, %v271
    %v864 = vsel %vm858, %v847, %v273
    %v865 = vsel %vm858, %v848, %v275
    %v866 = vsel %vm858, %v849, %v277
    %v867 = vsel %vm858, %v850, %v279
    %v868 = vsel %vm858, %v851, %v281
    %v869 = vsel %vm858, %v852, %v283
    %v870 = vsel %vm858, %v853, %v285
    %v871 = vsel %vm858, %v854, %v287
    %v872 = vsel %vm858, %v855, %v289
    %v873 = vsel %vm858, %v856, %v291
    %v874 = vsel %vm858, %v857, %v293
    %vm875 = vcmask 392192
    %v876 = vsel %vm875, %v859, %v311
    %v877 = vsel %vm875, %v860, %v313
    %v878 = vsel %vm875, %v861, %v315
    %v879 = vsel %vm875, %v862, %v317
    %v880 = vsel %vm875, %v863, %v319
    %v881 = vsel %vm875, %v864, %v321
    %v882 = vsel %vm875, %v865, %v323
    %v883 = vsel %vm875, %v866, %v325
    %v884 = vsel %vm875, %v867, %v327
    %v885 = vsel %vm875, %v868, %v329
    %v886 = vsel %vm875, %v869, %v331
    %v887 = vsel %vm875, %v870, %v333
    %v888 = vsel %vm875, %v871, %v335
    %v889 = vsel %vm875, %v872, %v337
    %v890 = vsel %vm875, %v873, %v339
    %v891 = vsel %vm875, %v874, %v341
    %vm892 = vcmask 457728
    %v893 = vsel %vm892, %v876, %v359
    %v894 = vsel %vm892, %v877, %v361
    %v895 = vsel %vm892, %v878, %v363
    %v896 = vsel %vm892, %v879, %v365
    %v897 = vsel %vm892, %v880, %v367
    %v898 = vsel %vm892, %v881, %v369
    %v899 = vsel %vm892, %v882, %v371
    %v900 = vsel %vm892, %v883, %v373
    %v901 = vsel %vm892, %v884, %v375
    %v902 = vsel %vm892, %v885, %v377
    %v903 = vsel %vm892, %v886, %v379
    %v904 = vsel %vm892, %v887, %v381
    %v905 = vsel %vm892, %v888, %v383
    %v906 = vsel %vm892, %v889, %v385
    %v907 = vsel %vm892, %v890, %v387
    %v908 = vsel %vm892, %v891, %v389
    %vm909 = vcmask 523264
    %v910 = vsel %vm909, %v893, %v407
    %v911 = vsel %vm909, %v894, %v409
    %v912 = vsel %vm909, %v895, %v411
    %v913 = vsel %vm909, %v896, %v413
    %v914 = vsel %vm909, %v897, %v415
    %v915 = vsel %vm909, %v898, %v417
    %v916 = vsel %vm909, %v899, %v419
    %v917 = vsel %vm909, %v900, %v421
    %v918 = vsel %vm909, %v901, %v423
    %v919 = vsel %vm909, %v902, %v425
    %v920 = vsel %vm909, %v903, %v427
    %v921 = vsel %vm909, %v904, %v429
    %v922 = vsel %vm909, %v905, %v431
    %v923 = vsel %vm909, %v906, %v433
    %v924 = vsel %vm909, %v907, %v435
    %v925 = vsel %vm909, %v908, %v437
    %vm926 = vcmask 588800
    %v927 = vsel %vm926, %v910, %v455
    %v928 = vsel %vm926, %v911, %v457
    %v929 = vsel %vm926, %v912, %v459
    %v930 = vsel %vm926, %v913, %v461
    %v931 = vsel %vm926, %v914, %v463
    %v932 = vsel %vm926, %v915, %v465
    %v933 = vsel %vm926, %v916, %v467
    %v934 = vsel %vm926, %v917, %v469
    %v935 = vsel %vm926, %v918, %v471
    %v936 = vsel %vm926, %v919, %v473
    %v937 = vsel %vm926, %v920, %v475
    %v938 = vsel %vm926, %v921, %v477
    %v939 = vsel %vm926, %v922, %v479
    %v940 = vsel %vm926, %v923, %v481
    %v941 = vsel %vm926, %v924, %v483
    %v942 = vsel %vm926, %v925, %v485
    %vm943 = vcmask 654336
    %v944 = vsel %vm943, %v927, %v503
    %v945 = vsel %vm943, %v928, %v505
    %v946 = vsel %vm943, %v929, %v507
    %v947 = vsel %vm943, %v930, %v509
    %v948 = vsel %vm943, %v931, %v511
    %v949 = vsel %vm943, %v932, %v513
    %v950 = vsel %vm943, %v933, %v515
    %v951 = vsel %vm943, %v934, %v517
    %v952 = vsel %vm943, %v935, %v519
    %v953 = vsel %vm943, %v936, %v521
    %v954 = vsel %vm943, %v937, %v523
    %v955 = vsel %vm943, %v938, %v525
    %v956 = vsel %vm943, %v939, %v527
    %v957 = vsel %vm943, %v940, %v529
    %v958 = vsel %vm943, %v941, %v531
    %v959 = vsel %vm943, %v942, %v533
    %vm960 = vcmask 719872
    %v961 = vsel %vm960, %v944, %v551
    %v962 = vsel %vm960, %v945, %v553
    %v963 = vsel %vm960, %v946, %v555
    %v964 = vsel %vm960, %v947, %v557
    %v965 = vsel %vm960, %v948, %v559
    %v966 = vsel %vm960, %v949, %v561
    %v967 = vsel %vm960, %v950, %v563
    %v968 = vsel %vm960, %v951, %v565
    %v969 = vsel %vm960, %v952, %v567
    %v970 = vsel %vm960, %v953, %v569
    %v971 = vsel %vm960, %v954, %v571
    %v972 = vsel %vm960, %v955, %v573
    %v973 = vsel %vm960, %v956, %v575
    %v974 = vsel %vm960, %v957, %v577
    %v975 = vsel %vm960, %v958, %v579
    %v976 = vsel %vm960, %v959, %v581
    %vm977 = vcmask 785408
    %v978 = vsel %vm977, %v961, %v599
    %v979 = vsel %vm977, %v962, %v601
    %v980 = vsel %vm977, %v963, %v603
    %v981 = vsel %vm977, %v964, %v605
    %v982 = vsel %vm977, %v965, %v607
    %v983 = vsel %vm977, %v966, %v609
    %v984 = vsel %vm977, %v967, %v611
    %v985 = vsel %vm977, %v968, %v613
    %v986 = vsel %vm977, %v969, %v615
    %v987 = vsel %vm977, %v970, %v617
    %v988 = vsel %vm977, %v971, %v619
    %v989 = vsel %vm977, %v972, %v621
    %v990 = vsel %vm977, %v973, %v623
    %v991 = vsel %vm977, %v974, %v625
    %v992 = vsel %vm977, %v975, %v627
    %v993 = vsel %vm977, %v976, %v629
    %vm994 = vcmask 850944
    %v995 = vsel %vm994, %v978, %v647
    %v996 = vsel %vm994, %v979, %v649
    %v997 = vsel %vm994, %v980, %v651
    %v998 = vsel %vm994, %v981, %v653
    %v999 = vsel %vm994, %v982, %v655
    %v1000 = vsel %vm994, %v983, %v657
    %v1001 = vsel %vm994, %v984, %v659
    %v1002 = vsel %vm994, %v985, %v661
    %v1003 = vsel %vm994, %v986, %v663
    %v1004 = vsel %vm994, %v987, %v665
    %v1005 = vsel %vm994, %v988, %v667
    %v1006 = vsel %vm994, %v989, %v669
    %v1007 = vsel %vm994, %v990, %v671
    %v1008 = vsel %vm994, %v991, %v673
    %v1009 = vsel %vm994, %v992, %v675
    %v1010 = vsel %vm994, %v993, %v677
    %vm1011 = vcmask 916480
    %v1012 = vsel %vm1011, %v995, %v695
    %v1013 = vsel %vm1011, %v996, %v697
    %v1014 = vsel %vm1011, %v997, %v699
    %v1015 = vsel %vm1011, %v998, %v701
    %v1016 = vsel %vm1011, %v999, %v703
    %v1017 = vsel %vm1011, %v1000, %v705
    %v1018 = vsel %vm1011, %v1001, %v707
    %v1019 = vsel %vm1011, %v1002, %v709
    %v1020 = vsel %vm1011, %v1003, %v711
    %v1021 = vsel %vm1011, %v1004, %v713
    %v1022 = vsel %vm1011, %v1005, %v715
    %v1023 = vsel %vm1011, %v1006, %v717
    %v1024 = vsel %vm1011, %v1007, %v719
    %v1025 = vsel %vm1011, %v1008, %v721
    %v1026 = vsel %vm1011, %v1009, %v723
    %v1027 = vsel %vm1011, %v1010, %v725
    %vm1028 = vcmask 982016
    %v1029 = vsel %vm1028, %v1012, %v743
    %v1030 = vsel %vm1028, %v1013, %v745
    %v1031 = vsel %vm1028, %v1014, %v747
    %v1032 = vsel %vm1028, %v1015, %v749
    %v1033 = vsel %vm1028, %v1016, %v751
    %v1034 = vsel %vm1028, %v1017, %v753
    %v1035 = vsel %vm1028, %v1018, %v755
    %v1036 = vsel %vm1028, %v1019, %v757
    %v1037 = vsel %vm1028, %v1020, %v759
    %v1038 = vsel %vm1028, %v1021, %v761
    %v1039 = vsel %vm1028, %v1022, %v763
    %v1040 = vsel %vm1028, %v1023, %v765
    %v1041 = vsel %vm1028, %v1024, %v767
    %v1042 = vsel %vm1028, %v1025, %v769
    %v1043 = vsel %vm1028, %v1026, %v771
    %v1044 = vsel %vm1028, %v1027, %v773
    %1045 = vst [vmem:[#allocation5] sm:$0xff] %v1029
    %1046 = vst [vmem:[#allocation5 + $0x8] sm:$0xff] %v1030
    %1047 = vst [vmem:[#allocation5 + $0x10] sm:$0xff] %v1031
    %1048 = vst [vmem:[#allocation5 + $0x18] sm:$0xff] %v1032
    %1049 = vst [vmem:[#allocation5 + $0x20] sm:$0xff] %v1033
    %1050 = vst [vmem:[#allocation5 + $0x28] sm:$0xff] %v1034
    %1051 = vst [vmem:[#allocation5 + $0x30] sm:$0xff] %v1035
    %1052 = vst [vmem:[#allocation5 + $0x38] sm:$0xff] %v1036
    %1053 = vst [vmem:[#allocation5 + $0x40] sm:$0xff] %v1037
    %1054 = vst [vmem:[#allocation5 + $0x48] sm:$0xff] %v1038
    %1055 = vst [vmem:[#allocation5 + $0x50] sm:$0xff] %v1039
    %1056 = vst [vmem:[#allocation5 + $0x58] sm:$0xff] %v1040
    %1057 = vst [vmem:[#allocation5 + $0x60] sm:$0xff] %v1041
    %1058 = vst [vmem:[#allocation5 + $0x68] sm:$0xff] %v1042
    %1059 = vst [vmem:[#allocation5 + $0x70] sm:$0xff] %v1043
    %1060 = vst [vmem:[#allocation5 + $0x78] sm:$0xff] %v1044
    // Predicated region
    $region10: #{tpu_custom_call.1} parent=1 // pred_check
      _
    $region11: #{tpu_custom_call.1} parent=1 // pred_check_branch
      %1062 = sbr.rel (0) target = $region13
    $region12: #{tpu_custom_call.1} parent=1 // pred_region
      %s1064 = ssub.s32 2048, 2048
      %1065 = vsyncadd [#allocation4], %s1064
      %s1066 = sshll.u32 [#allocation5], 4
      %s1067 = int_to_ptr.vmem [resolvable:$true] %s1066
      %1072 = dma.vmem_to_hbm [thread:$0]  %s1067, 2048, %s1, [#allocation4], 128, 128, 8
    $region13: #{tpu_custom_call.1} parent=1 // pred_fallthru
      _
    // Predicated region
    $region14: #{tpu_custom_call.1} parent=1 // pred_check
      _
    $region15: #{tpu_custom_call.1} parent=1 // pred_check_branch
      %1074 = sbr.rel (0) target = $region17
    $region16: #{tpu_custom_call.1} parent=1 // pred_region
      %1075 = dma.done [#allocation4], 2048
    $region17: #{tpu_custom_call.1} parent=1 // pred_fallthru
      _
    %1076 = vsyncpa [#allocation3], 1
    %1077 = vsyncpa [#allocation4], 1

</llo_original>
